<compile_context>
chip_gen: v6e
topology: v6e:2x2x1
jax: 0.10.0
libtpu: 0.0.40
codegen_flags: <defaults>
</compile_context>

<pallas_src>
import jax
import jax.numpy as jnp
from jax.experimental import pallas as pl
from jax.experimental.pallas import tpu as pltpu


_VMEM_LIMIT = 32 * 1024 * 1024  # fits v5e/v6e (128 MiB) and v7x (64 MiB) physical VMEM


def _pick_clips_per_block(B, T, D, itemsize, target_bytes=1 << 20, max_clips=64):
    """Pick clips-per-block nb and padded batch Bp (= ceil(B / nb) * nb).

    Blocks are sized by bytes (~1 MiB of v) so per-step overhead is amortized
    and DMAs run near the HBM roofline, but nb is capped at B // 2 so the
    parallel grid keeps >= 2 steps (v7x shards the parallel axis across its 2
    TensorCores).  If B has no divisor near the byte target, the caller pads
    the batch instead of silently degrading to tiny blocks.
    """
    clip_bytes = T * D * itemsize
    nb = int(max(1, min(target_bytes // clip_bytes, max(1, B // 2), max_clips)))
    div = max(d for d in range(1, nb + 1) if B % d == 0)
    if 2 * div >= nb:          # a divisor close enough to the byte target
        nb = div
    Bp = -(-B // nb) * nb
    return nb, Bp


def _maybe_pad_batch(v, Bp):
    B = v.shape[0]
    if Bp == B:
        return v
    return jnp.pad(v, ((0, Bp - B),) + ((0, 0),) * (v.ndim - 1))


def _frame_keep_mask(nb, T):
    """(nb*T, 1) f32 mask: 0.0 on frame 0 of every clip, 1.0 elsewhere."""
    R = nb * T
    return (jnp.arange(R) % T != 0).astype(jnp.float32)[:, None]


# ----------------------------- mode == 'sub' ---------------------------------
def _sub_kernel(v_ref, keep_ref, o_ref):
    v = v_ref[...].astype(jnp.float32)           # elementwise in f32 (v5e-safe)
    delta = v - pltpu.roll(v, shift=1, axis=0)   # prev frame via sublane rotate (XLU)
    # Frame 0 of every clip (and the block-wrap row of the roll) is zeroed by
    # the static keep mask, folded into the single full-block store.
    o_ref[...] = (delta * keep_ref[...]).astype(o_ref.dtype)


def visual_delta_encoder_sub(v):
    B, T, D = v.shape
    assert T % 8 == 0, "T must be a multiple of 8 for sublane-aligned clips"
    nb, Bp = _pick_clips_per_block(B, T, D, v.dtype.itemsize)
    v = _maybe_pad_batch(v, Bp)
    R = nb * T
    keep = _frame_keep_mask(nb, T)
    out = pl.pallas_call(
        _sub_kernel,
        out_shape=jax.ShapeDtypeStruct((Bp * T, D), v.dtype),
        grid=(Bp // nb,),
        in_specs=[
            pl.BlockSpec((R, D), lambda i: (i, 0)),
            pl.BlockSpec((R, 1), lambda i: (0, 0)),   # static frame-0 mask
        ],
        out_specs=pl.BlockSpec((R, D), lambda i: (i, 0)),
        compiler_params=pltpu.CompilerParams(
            dimension_semantics=("parallel",),
            vmem_limit_bytes=_VMEM_LIMIT),
    )(v.reshape(Bp * T, D), keep)
    return out.reshape(Bp, T, D)[:B]


# ----------------------------- mode == 'cat' ---------------------------------
def _cat_kernel(v_ref, w1ab_ref, b1_ref, w2_ref, b2_ref, keep_ref, o_ref):
    D = o_ref.shape[-1]
    v = v_ref[...]                               # MXU operands in storage dtype
    # cat([v[t], v[t-1]]) @ W1 == v[t] @ W1a + v[t-1] @ W1b.  One matmul with
    # the fused (D, 2D) RHS fills the 256-wide v6e/v7x MXU; the previous-frame
    # term is a sublane roll of the matmul *result* (no shifted copy of v).
    h12 = jnp.dot(v, w1ab_ref[...], preferred_element_type=jnp.float32)
    h = h12[:, :D] + pltpu.roll(h12[:, D:], shift=1, axis=0)
    h = jnp.maximum(h + b1_ref[...].astype(jnp.float32), 0.0)
    y = jnp.dot(h.astype(w2_ref.dtype), w2_ref[...],
                preferred_element_type=jnp.float32)
    y = y + b2_ref[...].astype(jnp.float32)
    # Frame-0 zeroing folded into the value -> single store per block.
    o_ref[...] = (y * keep_ref[...]).astype(o_ref.dtype)


def visual_delta_encoder_cat(v, w1, b1, w2, b2):
    """w1: (2D, D) == torch mlp[0].weight.T (current-frame rows first),
    b1: (1, D), w2: (D, D) == torch mlp[2].weight.T, b2: (1, D)."""
    B, T, D = v.shape
    assert T % 8 == 0, "T must be a multiple of 8 for sublane-aligned clips"
    assert D % 128 == 0, "emb_dim must be a multiple of 128 (lane-dense)"
    nb, Bp = _pick_clips_per_block(B, T, D, v.dtype.itemsize)
    v = _maybe_pad_batch(v, Bp)
    R = nb * T
    keep = _frame_keep_mask(nb, T)
    # Fuse the two W1 halves into one (D, 2D) RHS: columns [:D] -> current
    # frame, columns [D:] -> previous frame.
    w1ab = jnp.concatenate([w1[:D], w1[D:]], axis=1)
    # NOTE(v7x, large D): for D >= ~1024 the whole-weight constant blocks
    # should be single-buffered (pipeline_mode=pl.Buffered(1)) and/or tiled
    # over a K/N grid axis to respect the 64 MiB VMEM; unnecessary here.
    const = lambda i: (0, 0)
    out = pl.pallas_call(
        _cat_kernel,
        out_shape=jax.ShapeDtypeStruct((Bp * T, D), v.dtype),
        grid=(Bp // nb,),
        in_specs=[
            pl.BlockSpec((R, D), lambda i: (i, 0)),
            pl.BlockSpec((D, 2 * D), const),
            pl.BlockSpec((1, D), const),
            pl.BlockSpec((D, D), const),
            pl.BlockSpec((1, D), const),
            pl.BlockSpec((R, 1), const),              # static frame-0 mask
        ],
        out_specs=pl.BlockSpec((R, D), lambda i: (i, 0)),
        compiler_params=pltpu.CompilerParams(
            dimension_semantics=("parallel",),
            vmem_limit_bytes=_VMEM_LIMIT),
    )(v.reshape(Bp * T, D), w1ab, b1, w2, b2, keep)
    return out.reshape(Bp, T, D)[:B]


# ----------------------------- mode == 'tcn' ---------------------------------
# Depthwise Conv1d(D, D, k=3, dilation=2, padding=2, groups=D) applied to
# F.pad(v^T, (2, 0)), transposed back, frame 0 dropped and re-padded with a
# zero frame.  In channel-last form, for output frame j (output length T + 2):
#   out[0]         = 0
#   out[j], j >= 1 = w0 * v[j-4] + w1 * v[j-2] + w2 * v[j] + bias
# with v[t] = 0 outside [0, T).
def _tcn_kernel(v_ref, we_ref, wt_ref, o_ref):
    # v_ref:  (nb*T, D) input frames, nb clips back-to-back.
    # we_ref: (4*T, D)  per-frame "effective" tap weights [W0e; W1e; W2e; Be]
    #         with the conv's left-edge zero padding and the frame-0 zero row
    #         already folded in (static masks applied on the host).
    # wt_ref: (3, D)    raw [w0; w1; bias] for the 2 tail frames per clip.
    # o_ref:  (nb, T+2, D)
    nb, Tout, _ = o_ref.shape
    T = Tout - 2
    v = v_ref[...].astype(jnp.float32)
    m2 = pltpu.roll(v, shift=2, axis=0)          # v[r-2] (wrap rows killed by we)
    m4 = pltpu.roll(v, shift=4, axis=0)          # v[r-4]
    w0e = we_ref[0 * T:1 * T, :]
    w1e = we_ref[1 * T:2 * T, :]
    w2e = we_ref[2 * T:3 * T, :]
    be = we_ref[3 * T:4 * T, :]
    w0 = wt_ref[0:1, :]
    w1 = wt_ref[1:2, :]
    bt = wt_ref[2:3, :]
    # Tail frames j = T, T+1 of clip i are rows i*T + T-2, i*T + T-1 of
    #   w0 * v[r-2] + w1 * v[r] + bias   (the w2 tap reads past the clip -> 0),
    # computed for all clips in one shot from the already-rolled tile.
    tail_all = w0 * m2 + w1 * v + bt
    for i in range(nb):                          # nb is small and static
        s = i * T
        main = (w0e * m4[s:s + T, :] + w1e * m2[s:s + T, :]
                + w2e * v[s:s + T, :] + be)
        o_ref[i, 0:T, :] = main.astype(o_ref.dtype)
        o_ref[i, T:T + 2, :] = tail_all[s + T - 2:s + T, :].astype(o_ref.dtype)


def visual_delta_encoder_tcn(v, w, b):
    """w[k, c] == torch conv.weight[c, 0, k]; b: (1, D)."""
    B, T, D = v.shape
    assert T % 8 == 0, "T must be a multiple of 8 for sublane-aligned clips"
    nb, Bp = _pick_clips_per_block(B, T, D, v.dtype.itemsize)
    v = _maybe_pad_batch(v, Bp)
    Tout = T + 2
    # Static per-frame masks folded into the tap weights on the host:
    # frame t uses the v[t-4] tap only for t >= 4, the v[t-2] tap only for
    # t >= 2, and output frame 0 is identically zero.
    t = jnp.arange(T, dtype=jnp.float32)[:, None]
    wf = w.astype(jnp.float32)
    bf = b.astype(jnp.float32)
    w0e = jnp.where(t >= 4.0, 1.0, 0.0) * wf[0:1]
    w1e = jnp.where(t >= 2.0, 1.0, 0.0) * wf[1:2]
    nz = jnp.where(t >= 1.0, 1.0, 0.0)
    w2e = nz * wf[2:3]
    be = nz * bf
    we = jnp.concatenate([w0e, w1e, w2e, be], axis=0)          # (4T, D) f32
    wt = jnp.concatenate([wf[0:1], wf[1:2], bf], axis=0)       # (3, D)  f32
    # NOTE: with nb % 4 == 0 the output could be flattened to (B*(T+2), D) for
    # fully unmasked, sublane-aligned stores; kept as a 3-D block here so very
    # small batches (B = 2) still get >= 2 parallel grid steps.
    out = pl.pallas_call(
        _tcn_kernel,
        out_shape=jax.ShapeDtypeStruct((Bp, Tout, D), v.dtype),
        grid=(Bp // nb,),
        in_specs=[
            pl.BlockSpec((nb * T, D), lambda i: (i, 0)),
            pl.BlockSpec((4 * T, D), lambda i: (0, 0)),
            pl.BlockSpec((3, D), lambda i: (0, 0)),
        ],
        out_specs=pl.BlockSpec((nb, Tout, D), lambda i: (i, 0, 0)),
        compiler_params=pltpu.CompilerParams(
            dimension_semantics=("parallel",),
            vmem_limit_bytes=_VMEM_LIMIT),
    )(v.reshape(Bp * T, D), we, wt)
    return out[:B]


# ----------------------------- pure-JAX references ---------------------------
def _ref_sub(v):
    delta = v[:, 1:] - v[:, :-1]
    return jnp.concatenate([jnp.zeros_like(delta[:, :1]), delta], 1)


def _ref_cat(v, w1, b1, w2, b2):
    x = jnp.concatenate([v[:, 1:], v[:, :-1]], -1)             # (B, T-1, 2D)
    h = jnp.maximum(jnp.dot(x, w1, precision="highest") + b1, 0.0)
    y = jnp.dot(h, w2, precision="highest") + b2
    return jnp.concatenate([jnp.zeros_like(y[:, :1]), y], 1)


def _ref_tcn(v, w, b):
    T = v.shape[1]
    vp = jnp.pad(v, ((0, 0), (4, 2), (0, 0)))
    Tout = T + 2
    y = (vp[:, 0:Tout] * w[0] + vp[:, 2:2 + Tout] * w[1]
         + vp[:, 4:4 + Tout] * w[2] + b)
    return jnp.concatenate([jnp.zeros_like(y[:, :1]), y[:, 1:]], 1)


# ------------------------------------ main ------------------------------------
if __name__ == "__main__":
    B, T, D = 2, 16, 128        # lane-dense D, T % 8 == 0
    key = jax.random.PRNGKey(0)
    kv, k1, k2, k3, k4, k5, k6 = jax.random.split(key, 7)

    v = jax.random.normal(kv, (B, T, D), jnp.float32)

    # 'cat' MLP params: w1 == torch Linear(2D, D).weight.T (current rows first)
    w1 = 0.1 * jax.random.normal(k1, (2 * D, D), jnp.float32)
    b1 = 0.1 * jax.random.normal(k2, (1, D), jnp.float32)
    w2 = 0.1 * jax.random.normal(k3, (D, D), jnp.float32)
    b2 = 0.1 * jax.random.normal(k4, (1, D), jnp.float32)

    # 'tcn' depthwise conv params: w_tcn[k, c] == torch conv.weight[c, 0, k]
    w_tcn = 0.1 * jax.random.normal(k5, (3, D), jnp.float32)
    b_tcn = 0.1 * jax.random.normal(k6, (1, D), jnp.float32)

    # ---- f32 correctness ----
    out_sub = jax.block_until_ready(visual_delta_encoder_sub(v))
    out_cat = jax.block_until_ready(visual_delta_encoder_cat(v, w1, b1, w2, b2))
    out_tcn = jax.block_until_ready(visual_delta_encoder_tcn(v, w_tcn, b_tcn))

    assert out_sub.shape == (B, T, D)
    assert out_cat.shape == (B, T, D)
    assert out_tcn.shape == (B, T + 2, D)

    ref_sub = _ref_sub(v)
    ref_cat = _ref_cat(v, w1, b1, w2, b2)
    ref_tcn = _ref_tcn(v, w_tcn, b_tcn)

    assert jnp.allclose(out_sub, ref_sub, atol=1e-5), "sub mismatch"
    # Tolerance covers MXU f32 (multi-pass) vs XLA-reference matmul rounding;
    # structural bugs would show as O(0.3+) errors.
    assert jnp.allclose(out_cat, ref_cat, atol=3e-2, rtol=3e-2), "cat mismatch"
    assert jnp.allclose(out_tcn, ref_tcn, atol=1e-5), "tcn mismatch"

    # ---- bf16 I/O smoke test (halves HBM bytes on v6e/v7x; elementwise math
    # stays f32 in-kernel so v5e is also fine) ----
    bf = lambda x: x.astype(jnp.bfloat16)
    out_sub_bf = jax.block_until_ready(visual_delta_encoder_sub(bf(v)))
    out_cat_bf = jax.block_until_ready(
        visual_delta_encoder_cat(bf(v), bf(w1), bf(b1), bf(w2), bf(b2)))
    assert out_sub_bf.dtype == jnp.bfloat16 and out_cat_bf.dtype == jnp.bfloat16
    assert jnp.allclose(out_sub_bf.astype(jnp.float32), ref_sub,
                        atol=0.15, rtol=0.1), "sub bf16 mismatch"
    assert jnp.allclose(out_cat_bf.astype(jnp.float32), ref_cat,
                        atol=0.2, rtol=0.1), "cat bf16 mismatch"

    print("KERNEL_OK")
</pallas_src>

<mosaic_0001>
module attributes {stable_mosaic.version = 11 : i64} {
  func.func @_sub_kernel(%arg0: i32, %arg1: memref<16x128xf32, #tpu.memory_space<vmem>>, %arg2: memref<16x1xf32, #tpu.memory_space<vmem>>, %arg3: memref<16x128xf32, #tpu.memory_space<vmem>>) attributes {dimension_semantics = [#tpu.dimension_semantics<parallel>], iteration_bounds = array<i64: 2>, scalar_prefetch = 0 : i64, scratch_operands = 0 : i64, tpu.core_type = #tpu.core_type<tc>, window_params = [{transform_indices = @transform_0, window_bounds = array<i64: 16, 128>}, {pipeline_mode = #tpu.pipeline_mode<synchronous>, transform_indices = @transform_1, window_bounds = array<i64: 16, 1>}, {transform_indices = @transform_2, window_bounds = array<i64: 16, 128>}]} {
    %c0 = arith.constant 0 : index
    %c0_0 = arith.constant 0 : index
    %0 = vector.load %arg1[%c0, %c0_0] : memref<16x128xf32, #tpu.memory_space<vmem>>, vector<16x128xf32>
    %c1_i32 = arith.constant 1 : i32
    %1 = tpu.dynamic_rotate %0 by %c1_i32 dim 0 : vector<16x128xf32>, i32 -> vector<16x128xf32>
    %2 = arith.subf %0, %1 : vector<16x128xf32>
    %c0_1 = arith.constant 0 : index
    %c0_2 = arith.constant 0 : index
    %3 = vector.load %arg2[%c0_1, %c0_2] : memref<16x1xf32, #tpu.memory_space<vmem>>, vector<16x1xf32>
    %4 = vector.broadcast %3 : vector<16x1xf32> to vector<16x128xf32>
    %5 = arith.mulf %2, %4 : vector<16x128xf32>
    %c0_3 = arith.constant 0 : index
    %c0_4 = arith.constant 0 : index
    %6 = vector.load %arg3[%c0_3, %c0_4] : memref<16x128xf32, #tpu.memory_space<vmem>>, vector<16x128xf32>
    tpu.vector_store %arg3[%c0_3, %c0_4], %5 {strides = array<i32>} : memref<16x128xf32, #tpu.memory_space<vmem>>, vector<16x128xf32>,
    return
  }
  func.func @transform_0(%arg0: i32) -> (i32, i32) {
    %c0_i32 = arith.constant 0 : i32
    %c0_i32_0 = arith.constant 0 : i32
    return %arg0, %c0_i32 : i32, i32
  }
  func.func @transform_1(%arg0: i32) -> (i32, i32) {
    %c0_i32 = arith.constant 0 : i32
    %c0_i32_0 = arith.constant 0 : i32
    %c0_i32_1 = arith.constant 0 : i32
    return %c0_i32, %c0_i32_0 : i32, i32
  }
  func.func @transform_2(%arg0: i32) -> (i32, i32) {
    %c0_i32 = arith.constant 0 : i32
    %c0_i32_0 = arith.constant 0 : i32
    return %arg0, %c0_i32 : i32, i32
  }
}

</mosaic_0001>

<llo_original>
// kernel: tpu_custom_call.1
$region0: #{tpu_custom_call.1}
  #allocation0 [shape = 'u32[]', space=smem, size = 0x4, offset = 0x4, fixed_abs, tag = 'smem constant byte address 0x4 - core index']
  #allocation1 [shape = 'u32[144,128]{1,0:T(1,128)}', space=vmem, size = 0x12000, scoped, tag = 'internal scratch']
  %s0 = inlined_call_operand.hbm [shape: f32[32,128], index: 0, kind: input, shape index: {}]
  %s1 = inlined_call_operand.vmem [shape: f32[16,1], index: 1, kind: input, shape index: {}]
  %s2 = inlined_call_operand.hbm [shape: f32[32,128], index: 2, kind: output, shape index: {}]
  %s3 = sld [smem:[#allocation0]]
  $region45: #{tpu_custom_call.1} parent=0
    _
  %s5 = ssub.s32 1, %s3
  %s6 = scalar_select 0, %s5, %s3
  $region1: #{tpu_custom_call.1} parent=0
    #allocation2 [shape = 'u8[16384]{0}', space=vmem, size = 0x4000, scoped, tag = 'input window, operand 0']
    #allocation3 [shape = 's32[2]{0}', space=sflag, size = 0x8, scoped, tag = 'scoped memory for tpu_custom_call.1']
    #allocation4 [shape = 's32[2]{0}', space=sflag, size = 0x8, scoped, tag = 'scoped memory for tpu_custom_call.1']
    #allocation5 [shape = 'u8[16384]{0}', space=vmem, size = 0x4000, scoped, tag = 'output window, operand 0']
    %7 = vsyncpa [#allocation3], 0
    %s8 = scalar_lea.sflag [#allocation3], 1
    %9 = vsyncpa %s8, 0
    %10 = vsyncpa [#allocation4], 0
    %s11 = scalar_lea.sflag [#allocation4], 1
    %12 = vsyncpa %s11, 0
    loop: start=0, step=1, limit=4
    $region2: #{tpu_custom_call.1} parent=1 // loop_pre_header
      _
    $region3: #{tpu_custom_call.1} parent=1 // loop_header
      %s14 = sphi 0, %s18
      %p15 = scmp.ge.s32.totalorder %s14, 4
      %s24 = sphi 0, %s26
      %s27 = sphi 0, %s24
      %s28 = sphi 0, %s27
      %s44 = sphi 0, %s28
      %s48 = sphi 0, %s48
      %s50 = sphi 0, %s48
      %s51 = sphi 0, %s50
      %s65 = sphi 0, %s51
      %s71 = sphi 0, %s73
      %s74 = sphi 0, %s71
      %s75 = sphi 0, %s74
      %s91 = sphi 0, %s75
    $region4: #{tpu_custom_call.1} parent=1 // loop_header_branch
      %17 = sbr.rel (%p15) target = $region8
    $region5: #{tpu_custom_call.1} parent=1 // loop_body
      %s19 = ssub.s32 %s14, 1
      %s20 = ssub.s32 %s14, 2
      %s21 = sadd.s32 %s14, 1
      %s22 = ssub.s32 %s14, %s21
      %p23 = scmp.eq.s32.totalorder %s22, 0
      %s25 = sadd.s32 %s24, 1
      %s26 = scalar_select %p23, %s24, %s25
      %p29 = pneg %p23
      %p30 = scmp.eq.s32.totalorder %s14, 1
      %p31 = por %p29, %p30
      %p32 = scmp.ne.s32.totalorder %s24, %s27
      %p33 = scmp.eq.s32.totalorder %s14, 0
      %p34 = por %p32, %p33
      %p35 = scmp.ne.s32.totalorder %s24, %s27
      %p36 = scmp.eq.s32.totalorder %s19, 1
      %p37 = por %p35, %p36
      %p38 = scmp.ne.s32.totalorder %s27, %s28
      %p39 = scmp.eq.s32.totalorder %s19, 0
      %p40 = por %p38, %p39
      %p41 = scmp.ne.s32.totalorder %s27, %s28
      %p42 = scmp.eq.s32.totalorder %s20, 1
      %p43 = por %p41, %p42
      %p45 = scmp.ne.s32.totalorder %s28, %s44
      %p46 = scmp.eq.s32.totalorder %s20, 0
      %p47 = por %p45, %p46
      %s49 = sadd.s32 %s48, 1
      %p52 = scmp.eq.s32.totalorder %s14, 1
      %p53 = scmp.ne.s32.totalorder %s48, %s50
      %p54 = scmp.eq.s32.totalorder %s14, 0
      %p55 = por %p53, %p54
      %p56 = scmp.ne.s32.totalorder %s48, %s50
      %p57 = scmp.eq.s32.totalorder %s19, 1
      %p58 = por %p56, %p57
      %p59 = scmp.ne.s32.totalorder %s50, %s51
      %p60 = scmp.eq.s32.totalorder %s19, 0
      %p61 = por %p59, %p60
      %p62 = scmp.ne.s32.totalorder %s50, %s51
      %p63 = scmp.eq.s32.totalorder %s20, 1
      %p64 = por %p62, %p63
      %p66 = scmp.ne.s32.totalorder %s51, %s65
      %p67 = scmp.eq.s32.totalorder %s20, 0
      %p68 = por %p66, %p67
      %s69 = ssub.s32 %s14, %s21
      %p70 = scmp.eq.s32.totalorder %s69, 0
      %s72 = sadd.s32 %s71, 1
      %s73 = scalar_select %p70, %s71, %s72
      %p76 = pneg %p70
      %p77 = scmp.eq.s32.totalorder %s14, 1
      %p78 = por %p76, %p77
      %p79 = scmp.ne.s32.totalorder %s71, %s74
      %p80 = scmp.eq.s32.totalorder %s14, 0
      %p81 = por %p79, %p80
      %p82 = scmp.ne.s32.totalorder %s71, %s74
      %p83 = scmp.eq.s32.totalorder %s19, 1
      %p84 = por %p82, %p83
      %p85 = scmp.ne.s32.totalorder %s74, %s75
      %p86 = scmp.eq.s32.totalorder %s19, 0
      %p87 = por %p85, %p86
      %p88 = scmp.ne.s32.totalorder %s74, %s75
      %p89 = scmp.eq.s32.totalorder %s20, 1
      %p90 = por %p88, %p89
      %p92 = scmp.ne.s32.totalorder %s75, %s91
      %p93 = scmp.eq.s32.totalorder %s20, 0
      %p94 = por %p92, %p93
      %p95 = scmp.le.s32.totalorder 1, %s14
      %p96 = scmp.lt.s32.totalorder %s14, 3
      %p97 = pnand %p95, %p96
      %p98 = pneg %p97
      // Predicated region
      $region9: #{tpu_custom_call.1} parent=5 // pred_check
        _
      $region10: #{tpu_custom_call.1} parent=5 // pred_check_branch
        %100 = sbr.rel (%p97) target = $region12
      $region11: #{tpu_custom_call.1} parent=5 // pred_region
        %s101 = ssub.s32 %s14, 1
        // Predicated region
        $region13: #{tpu_custom_call.1} parent=11 // pred_check
          %p102 = pneg %p61
        $region14: #{tpu_custom_call.1} parent=11 // pred_check_branch
          %104 = sbr.rel (%p102) target = $region16
        $region15: #{tpu_custom_call.1} parent=11 // pred_region
          _
        $region16: #{tpu_custom_call.1} parent=11 // pred_fallthru
          _
      $region12: #{tpu_custom_call.1} parent=5 // pred_fallthru
        _
      %p105 = scmp.lt.s32.totalorder %s14, 2
      // Predicated region
      $region17: #{tpu_custom_call.1} parent=5 // pred_check
        %p106 = pneg %p105
      $region18: #{tpu_custom_call.1} parent=5 // pred_check_branch
        %108 = sbr.rel (%p106) target = $region20
      $region19: #{tpu_custom_call.1} parent=5 // pred_region
        // Predicated region
        $region21: #{tpu_custom_call.1} parent=19 // pred_check
          %p109 = pneg %p34
        $region22: #{tpu_custom_call.1} parent=19 // pred_check_branch
          %111 = sbr.rel (%p109) target = $region24
        $region23: #{tpu_custom_call.1} parent=19 // pred_region
          %s112 = sand.u32 %s24, 1
          %s113 = scalar_lea.sflag [#allocation3], %s112
          %s114 = sand.u32 %s24, 1
          %s115 = smul.addr %s114, 16
          %s116 = scalar_lea.vmem [#allocation2], %s115
          %s117 = smul.u32 2, %s14
          %s119 = ssub.s32 256, 256
          %120 = vsyncadd %s113, %s119
          %s121 = smul.addr %s117, 128
          %s122 = scalar_lea.hbm %s0, %s121
          %s123 = sshll.u32 %s116, 4
          %s124 = int_to_ptr.vmem [resolvable:$true] %s123
          %129 = dma.hbm_to_vmem [thread:$0]  %s122, 256, %s124, %s113, 128, 128, 8
        $region24: #{tpu_custom_call.1} parent=19 // pred_fallthru
          _
      $region20: #{tpu_custom_call.1} parent=5 // pred_fallthru
        _
      %p130 = scmp.le.s32.totalorder 1, %s14
      %p131 = scmp.lt.s32.totalorder %s14, 3
      %p132 = pnand %p130, %p131
      %p133 = pneg %p132
      // Predicated region
      $region25: #{tpu_custom_call.1} parent=5 // pred_check
        _
      $region26: #{tpu_custom_call.1} parent=5 // pred_check_branch
        %135 = sbr.rel (%p132) target = $region28
      $region27: #{tpu_custom_call.1} parent=5 // pred_region
        %s136 = ssub.s32 %s14, 1
        %s137 = sand.u32 %s27, 1
        %s138 = scalar_lea.sflag [#allocation3], %s137
        %s139 = sand.u32 %s27, 1
        %s140 = smul.addr %s139, 16
        %s141 = scalar_lea.vmem [#allocation2], %s140
        // Predicated region
        $region29: #{tpu_custom_call.1} parent=27 // pred_check
          %p142 = pneg %p40
        $region30: #{tpu_custom_call.1} parent=27 // pred_check_branch
          %144 = sbr.rel (%p142) target = $region32
        $region31: #{tpu_custom_call.1} parent=27 // pred_region
          %145 = dma.done %s138, 256
        $region32: #{tpu_custom_call.1} parent=27 // pred_fallthru
          _
        %s146 = sand.u32 %s27, 1
        %s147 = scalar_lea.sflag [#allocation3], %s146
        %s148 = sand.u32 %s27, 1
        %s149 = smul.addr %s148, 16
        %s150 = scalar_lea.vmem [#allocation2], %s149
        %p151 = pneg %p40
        %p152 = pneg %p37
        %p153 = pneg %p61
        %p154 = pneg %p58
        %p155 = pneg %p87
        %p156 = pneg %p84
        %s157 = sand.u32 %s74, 1
        %s158 = scalar_lea.sflag [#allocation4], %s157
        %s159 = sand.u32 %s74, 1
        %s160 = smul.addr %s159, 16
        %s161 = scalar_lea.vmem [#allocation5], %s160
        %s162 = smul.u32 2, %s19
        %s163 = smul.u32 2, %s19
        %v164 = vld [vmem:[%s141] sm:$0xff]
        %v165 = vld [vmem:[%s141 + $0x8] sm:$0xff]
        %v166 = vrot.slane %v164, 7
        %v167 = vrot.slane %v165, 7
        %v168 = vlaneseq
        %v169 = vshrl.u32 %v168, 7
        %vm170 = vcmp.lt.s32.totalorder %v169, 1
        %v171 = vsel %vm170, %v166, %v167
        %v172 = vsel %vm170, %v167, %v166
        %v173 = vsub.f32 %v164, %v172
        %v174 = vsub.f32 %v165, %v171
        %v175 = vld [vmem:[%s1] sm:$0xff]
        %v176 = vld [vmem:[%s1 + $0x8] sm:$0xff]
        %178 = vset.pattern.permute.xlu0 0
        %179 = vperm.xlu0 %178, %v175
        %v180 = vpop.permute.xlu0 %179
        %183 = vset.pattern.permute.xlu0 0
        %184 = vperm.xlu0 %183, %v176
        %v185 = vpop.permute.xlu0 %184
        %v187 = vmul.f32 %v173, %v180
        %v188 = vmul.f32 %v174, %v185
        %189 = vst [vmem:[%s161] sm:$0xff] %v187
        %190 = vst [vmem:[%s161 + $0x8] sm:$0xff] %v188
        %s191 = sand.u32 %s74, 1
        %s192 = scalar_lea.sflag [#allocation4], %s191
        %s193 = sand.u32 %s74, 1
        %s194 = smul.addr %s193, 16
        %s195 = scalar_lea.vmem [#allocation5], %s194
        // Predicated region
        $region33: #{tpu_custom_call.1} parent=27 // pred_check
          %p196 = pneg %p84
        $region34: #{tpu_custom_call.1} parent=27 // pred_check_branch
          %198 = sbr.rel (%p196) target = $region36
        $region35: #{tpu_custom_call.1} parent=27 // pred_region
          %s199 = smul.u32 2, %s19
          %s201 = ssub.s32 256, 256
          %202 = vsyncadd %s192, %s201
          %s203 = smul.addr %s199, 128
          %s204 = scalar_lea.hbm %s2, %s203
          %s205 = sshll.u32 %s195, 4
          %s206 = int_to_ptr.vmem [resolvable:$true] %s205
          %211 = dma.vmem_to_hbm [thread:$0]  %s206, 256, %s204, %s192, 128, 128, 8
        $region36: #{tpu_custom_call.1} parent=27 // pred_fallthru
          _
      $region28: #{tpu_custom_call.1} parent=5 // pred_fallthru
        _
      %p212 = scmp.le.s32.totalorder 2, %s14
      // Predicated region
      $region37: #{tpu_custom_call.1} parent=5 // pred_check
        %p213 = pneg %p212
      $region38: #{tpu_custom_call.1} parent=5 // pred_check_branch
        %215 = sbr.rel (%p213) target = $region40
      $region39: #{tpu_custom_call.1} parent=5 // pred_region
        %s216 = ssub.s32 %s14, 2
        // Predicated region
        $region41: #{tpu_custom_call.1} parent=39 // pred_check
          %p217 = pneg %p90
        $region42: #{tpu_custom_call.1} parent=39 // pred_check_branch
          %219 = sbr.rel (%p217) target = $region44
        $region43: #{tpu_custom_call.1} parent=39 // pred_region
          %s220 = sand.u32 %s75, 1
          %s221 = scalar_lea.sflag [#allocation4], %s220
          %s222 = sand.u32 %s75, 1
          %s223 = smul.addr %s222, 16
          %s224 = scalar_lea.vmem [#allocation5], %s223
          %225 = dma.done %s221, 256
        $region44: #{tpu_custom_call.1} parent=39 // pred_fallthru
          _
      $region40: #{tpu_custom_call.1} parent=5 // pred_fallthru
        _
    $region6: #{tpu_custom_call.1} parent=1 // loop_footer
      %s18 = sadd.s32 1, %s14
    $region7: #{tpu_custom_call.1} parent=1 // loop_footer_branch
      %13 = sbr.rel target = $region3
    $region8: #{tpu_custom_call.1} parent=1 // loop_exit
      _
    %226 = vsyncpa [#allocation3], 1
    %s227 = scalar_lea.sflag [#allocation3], 1
    %228 = vsyncpa %s227, 1
    %229 = vsyncpa [#allocation4], 1
    %s230 = scalar_lea.sflag [#allocation4], 1
    %231 = vsyncpa %s230, 1

</llo_original>
